<compile_context>
chip_gen: v5e
topology: v5e:2x2
jax: 0.10.0
libtpu: 0.0.40
codegen_flags: <defaults>
</compile_context>

<pallas_src>
import math

import jax
import jax.numpy as jnp
from jax.experimental import pallas as pl
from jax.experimental.pallas import tpu as pltpu


# ---------------------------------------------------------------------------
# Kernel 1: batch-invariant positional encoding (runs once, single grid step)
# ---------------------------------------------------------------------------
def _pos_enc_kernel(pos_ref, mu_ref, sigma_ref, emb_ref, pe_ref):
    pos = pos_ref[...]                          # (S, K) f32
    mu = mu_ref[...]                            # (1, K) f32
    sigma = sigma_ref[...]                      # (1, K) f32

    inv_two_sigma = pl.reciprocal(2.0 * sigma)                 # exact EUP recip
    a = pos - mu
    log_p = -(a * a) * inv_two_sigma - 0.5 * jnp.log(sigma)    # (S, K)

    # numerically stable softmax over K (axis=1)
    m_max = jnp.max(log_p, axis=1, keepdims=True)
    e = jnp.exp(log_p - m_max)
    denom = jnp.sum(e, axis=1, keepdims=True)
    m = e * pl.reciprocal(denom)                               # (S, K)

    pe = jnp.dot(m, emb_ref[...], preferred_element_type=jnp.float32)
    pe_ref[...] = pe.astype(pe_ref.dtype)                      # (S, D)


def _compute_pos_enc(positions, mu, sigma, embedding, out_dtype):
    S, K = positions.shape
    D = embedding.shape[1]
    return pl.pallas_call(
        _pos_enc_kernel,
        out_shape=jax.ShapeDtypeStruct((S, D), out_dtype),
        grid_spec=pltpu.PrefetchScalarGridSpec(
            num_scalar_prefetch=0,
            grid=(1,),
            in_specs=[
                pl.BlockSpec((S, K), lambda i: (0, 0)),   # positions
                pl.BlockSpec((1, K), lambda i: (0, 0)),   # mu
                pl.BlockSpec((1, K), lambda i: (0, 0)),   # sigma
                pl.BlockSpec((K, D), lambda i: (0, 0)),   # embedding
            ],
            out_specs=pl.BlockSpec((S, D), lambda i: (0, 0)),
        ),
        compiler_params=pltpu.CompilerParams(
            dimension_semantics=("arbitrary",),
            vmem_limit_bytes=32 << 20),
    )(positions, mu, sigma, embedding)


# ---------------------------------------------------------------------------
# Kernel 2: lane-dense broadcast add over the batch (pure HBM-bound add)
# ---------------------------------------------------------------------------
def _add_pos_kernel(x_ref, pe_ref, o_ref):
    # numpy broadcasting: pe block broadcasts across the leading batch dim
    # (B, tc) + (1, tc)  or  (B, rt, 128) + (rt, 128)
    o_ref[...] = (x_ref[...] + pe_ref[...]).astype(o_ref.dtype)


_TILE_BUDGET_BYTES = 8 << 20   # double-buffered per-step blocks stay under this
_VMEM_LIMIT_BYTES = 32 << 20   # explicit scoped-VMEM limit (safe on v5e/v6e/v7x)
_MIN_GRID_STEPS = 8            # keep both v7x TCs fed + DMA/compute overlap


def _sublane_multiple(itemsize):
    # f32 packs (8,128), bf16 (16,128), int8/fp8 (32,128)
    return 8 * max(1, 4 // itemsize)


def _round_down(v, m):
    return max(m, (v // m) * m)


def _round_up(v, m):
    return -(-v // m) * m


def _pick_rows_tile(R, B, itemsize, budget_bytes, min_steps):
    """Row tile for the (B, R, 128) layout (small-batch path)."""
    sub = _sublane_multiple(itemsize)
    if R <= sub:
        return R                                    # single block == full dim
    per_row = 128 * itemsize * (2 * B + 1)          # x + out + pe per 128-lane row
    rt = _round_down(budget_bytes // (2 * per_row), sub)   # double-buffered
    target = _round_up(-(-R // min_steps), sub)     # >= min_steps grid steps
    target = max(target, 4 * sub)                   # avoid microscopic blocks
    rt = min(rt, target, _round_down(R, sub))
    return max(sub, rt)


def _pick_col_tile(C, B, itemsize, budget_bytes, min_steps):
    """Column tile (multiple of 128) for the flattened (B, C) layout.

    Sublane-padding aware: a (B, tile) block physically occupies
    ceil(B/sub)*sub sublanes and the (1, tile) pe block occupies `sub`.
    """
    if C <= 128:
        return C                                    # single block == full dim
    sub = _sublane_multiple(itemsize)
    rows_eff = _round_up(B, sub)                    # padded x / out rows
    per_col = itemsize * (2 * rows_eff + sub)       # x + out + pe, per column
    tile = _round_down(budget_bytes // (2 * per_col), 128)  # double-buffered
    target = _round_up(-(-C // min_steps), 128)     # >= min_steps grid steps
    target = max(target, 512)                       # >=512 lanes for HBM roofline
    tile = min(tile, target, _round_up(C, 128))     # never exceed (padded) array
    return max(128, tile)


def gaussian_position_forward(x, positions, mu, sigma, embedding,
                              *, tile_budget_bytes=_TILE_BUDGET_BYTES,
                              min_grid_steps=_MIN_GRID_STEPS):
    """x: [B, S, D]; positions: [S, K]; mu/sigma: [1, K]; embedding: [K, D]."""
    B, S, D = x.shape
    itemsize = jnp.dtype(x.dtype).itemsize

    # ---- kernel 1: pos_enc (batch-invariant, computed exactly once) -------
    pos_enc = _compute_pos_enc(positions, mu, sigma, embedding, x.dtype)

    C = S * D
    cparams = pltpu.CompilerParams(
        dimension_semantics=("parallel",),
        vmem_limit_bytes=_VMEM_LIMIT_BYTES)

    if B < _sublane_multiple(itemsize) and C % 128 == 0:
        # ---- small batch: (B, R, 128) layout, tile over position rows -----
        # Position rows fill the sublanes, so no (8,128) padding waste from
        # a tiny batch dim (4x less VMEM / fuller vregs than (B, C) blocks).
        R = C // 128
        x3 = x.reshape(B, R, 128)                 # free row-major views
        pe3 = pos_enc.reshape(R, 128)
        rt = _pick_rows_tile(R, B, itemsize, tile_budget_bytes, min_grid_steps)
        out3 = pl.pallas_call(
            _add_pos_kernel,
            out_shape=jax.ShapeDtypeStruct((B, R, 128), x.dtype),
            grid_spec=pltpu.PrefetchScalarGridSpec(
                num_scalar_prefetch=0,
                grid=(pl.cdiv(R, rt),),
                in_specs=[
                    pl.BlockSpec((B, rt, 128), lambda r: (0, r, 0)),   # x
                    pl.BlockSpec((rt, 128), lambda r: (r, 0)),         # pos_enc
                ],
                out_specs=pl.BlockSpec((B, rt, 128), lambda r: (0, r, 0)),
            ),
            compiler_params=cparams,
        )(x3, pe3)
        return out3.reshape(B, S, D)

    # ---- general case: flattened (B, C) layout, tile over lane columns ----
    x2 = x.reshape(B, C)                          # free row-major views
    pe2 = pos_enc.reshape(1, C)
    tc = _pick_col_tile(C, B, itemsize, tile_budget_bytes, min_grid_steps)
    out2 = pl.pallas_call(
        _add_pos_kernel,
        out_shape=jax.ShapeDtypeStruct((B, C), x.dtype),
        grid_spec=pltpu.PrefetchScalarGridSpec(
            num_scalar_prefetch=0,
            grid=(pl.cdiv(C, tc),),                 # ragged last block is masked
            in_specs=[
                pl.BlockSpec((B, tc), lambda c: (0, c)),    # x (flattened)
                pl.BlockSpec((1, tc), lambda c: (0, c)),    # pos_enc (flat)
            ],
            out_specs=pl.BlockSpec((B, tc), lambda c: (0, c)),
        ),
        compiler_params=cparams,
    )(x2, pe2)
    return out2.reshape(B, S, D)


# ---------------------------------------------------------------------------
# Parameter construction mirroring Gaussian_Position.__init__ + pure-JAX ref
# ---------------------------------------------------------------------------
def make_params(key, d_model, total_size, K):
    # embedding: xavier_uniform over [K, d_model]
    bound = math.sqrt(6.0 / (K + d_model))
    embedding = jax.random.uniform(
        key, (K, d_model), dtype=jnp.float32, minval=-bound, maxval=bound)

    # positions: [total_size, K], each row i repeated K times
    positions = jnp.tile(
        jnp.arange(total_size, dtype=jnp.float32)[:, None], (1, K))

    # mu: [1, K] = [0, interval, 2*interval, ...]
    interval = total_size / K
    mu = (jnp.arange(K, dtype=jnp.float32) * interval)[None, :]

    # sigma: [1, K] all 50.0
    sigma = jnp.full((1, K), 50.0, dtype=jnp.float32)

    return positions, mu, sigma, embedding


def reference_forward(x, positions, mu, sigma, embedding):
    a = positions - mu
    log_p = -(a * a) / (2.0 * sigma) - jnp.log(sigma) / 2.0
    m = jax.nn.softmax(log_p, axis=1)
    pos_enc = m @ embedding
    return x + pos_enc[None, :, :]


if __name__ == "__main__":
    B, S, D, K = 2, 16, 32, 10   # batch, total_size, d_model, K gaussians

    key = jax.random.PRNGKey(0)
    k_emb, k_x = jax.random.split(key)

    positions, mu, sigma, embedding = make_params(k_emb, D, S, K)
    x = jax.random.normal(k_x, (B, S, D), dtype=jnp.float32)

    out = gaussian_position_forward(x, positions, mu, sigma, embedding)
    out = jax.block_until_ready(out)

    ref = reference_forward(x, positions, mu, sigma, embedding)
    assert out.shape == (B, S, D)
    assert jnp.allclose(out, ref, atol=1e-5, rtol=1e-5), "mismatch vs reference"

    print("KERNEL_OK")
</pallas_src>

<mosaic_0001>
module attributes {stable_mosaic.version = 11 : i64} {
  func.func @_pos_enc_kernel(%arg0: i32, %arg1: memref<16x10xf32, #tpu.memory_space<vmem>>, %arg2: memref<1x10xf32, #tpu.memory_space<vmem>>, %arg3: memref<1x10xf32, #tpu.memory_space<vmem>>, %arg4: memref<10x32xf32, #tpu.memory_space<vmem>>, %arg5: memref<16x32xf32, #tpu.memory_space<vmem>>) attributes {dimension_semantics = [#tpu.dimension_semantics<arbitrary>], iteration_bounds = array<i64: 1>, scalar_prefetch = 0 : i64, scratch_operands = 0 : i64, tpu.core_type = #tpu.core_type<tc>, window_params = [{pipeline_mode = #tpu.pipeline_mode<synchronous>, transform_indices = @transform_0, window_bounds = array<i64: 16, 10>}, {pipeline_mode = #tpu.pipeline_mode<synchronous>, transform_indices = @transform_1, window_bounds = array<i64: 1, 10>}, {pipeline_mode = #tpu.pipeline_mode<synchronous>, transform_indices = @transform_2, window_bounds = array<i64: 1, 10>}, {pipeline_mode = #tpu.pipeline_mode<synchronous>, transform_indices = @transform_3, window_bounds = array<i64: 10, 32>}, {pipeline_mode = #tpu.pipeline_mode<synchronous>, transform_indices = @transform_4, window_bounds = array<i64: 16, 32>}]} {
    %c0 = arith.constant 0 : index
    %c0_0 = arith.constant 0 : index
    %0 = vector.load %arg1[%c0, %c0_0] : memref<16x10xf32, #tpu.memory_space<vmem>>, vector<16x10xf32>
    %c0_1 = arith.constant 0 : index
    %c0_2 = arith.constant 0 : index
    %1 = vector.load %arg2[%c0_1, %c0_2] : memref<1x10xf32, #tpu.memory_space<vmem>>, vector<1x10xf32>
    %c0_3 = arith.constant 0 : index
    %c0_4 = arith.constant 0 : index
    %2 = vector.load %arg3[%c0_3, %c0_4] : memref<1x10xf32, #tpu.memory_space<vmem>>, vector<1x10xf32>
    %cst = arith.constant 2.000000e+00 : f32
    %3 = vector.broadcast %cst : f32 to vector<1x10xf32>
    %4 = arith.mulf %3, %2 : vector<1x10xf32>
    %5 = tpu.reciprocal %4 : vector<1x10xf32> -> vector<1x10xf32>
    %6 = vector.broadcast %1 : vector<1x10xf32> to vector<16x10xf32>
    %7 = arith.subf %0, %6 : vector<16x10xf32>
    %8 = arith.mulf %7, %7 : vector<16x10xf32>
    %cst_5 = arith.constant 0.000000e+00 : f32
    %9 = vector.broadcast %cst_5 : f32 to vector<16x10xf32>
    %10 = arith.subf %9, %8 : vector<16x10xf32>
    %11 = vector.broadcast %5 : vector<1x10xf32> to vector<16x10xf32>
    %12 = arith.mulf %10, %11 : vector<16x10xf32>
    %13 = math.log %2 : vector<1x10xf32>
    %cst_6 = arith.constant 5.000000e-01 : f32
    %14 = vector.broadcast %cst_6 : f32 to vector<1x10xf32>
    %15 = arith.mulf %14, %13 : vector<1x10xf32>
    %16 = vector.broadcast %15 : vector<1x10xf32> to vector<16x10xf32>
    %17 = arith.subf %12, %16 : vector<16x10xf32>
    %cst_7 = arith.constant dense<0xFF800000> : vector<16xf32>
    %18 = vector.multi_reduction <maximumf>, %17, %cst_7 [1] : vector<16x10xf32> to vector<16xf32>
    %19 = vector.shape_cast %18 : vector<16xf32> to vector<16x1xf32>
    %20 = vector.broadcast %19 : vector<16x1xf32> to vector<16x10xf32>
    %21 = arith.subf %17, %20 : vector<16x10xf32>
    %22 = math.exp %21 : vector<16x10xf32>
    %cst_8 = arith.constant dense<0.000000e+00> : vector<16xf32>
    %23 = vector.multi_reduction <add>, %22, %cst_8 [1] : vector<16x10xf32> to vector<16xf32>
    %24 = vector.shape_cast %23 : vector<16xf32> to vector<16x1xf32>
    %25 = tpu.reciprocal %24 : vector<16x1xf32> -> vector<16x1xf32>
    %26 = vector.broadcast %25 : vector<16x1xf32> to vector<16x10xf32>
    %27 = arith.mulf %22, %26 : vector<16x10xf32>
    %c0_9 = arith.constant 0 : index
    %c0_10 = arith.constant 0 : index
    %28 = vector.load %arg4[%c0_9, %c0_10] : memref<10x32xf32, #tpu.memory_space<vmem>>, vector<10x32xf32>
    %cst_11 = arith.constant dense<0.000000e+00> : vector<16x32xf32>
    %29 = tpu.matmul %27, %28, %cst_11 {dimension_numbers = #tpu.dot_dimension_numbers<[1], [0], [0], [1], [0, 0, 1, 1], [], []>} : vector<16x10xf32>, vector<10x32xf32>, vector<16x32xf32> -> vector<16x32xf32>
    %c0_12 = arith.constant 0 : index
    %c0_13 = arith.constant 0 : index
    %30 = vector.load %arg5[%c0_12, %c0_13] : memref<16x32xf32, #tpu.memory_space<vmem>>, vector<16x32xf32>
    tpu.vector_store %arg5[%c0_12, %c0_13], %29 {strides = array<i32>} : memref<16x32xf32, #tpu.memory_space<vmem>>, vector<16x32xf32>,
    return
  }
  func.func @transform_0(%arg0: i32) -> (i32, i32) {
    %c0_i32 = arith.constant 0 : i32
    %c0_i32_0 = arith.constant 0 : i32
    %c0_i32_1 = arith.constant 0 : i32
    return %c0_i32, %c0_i32_0 : i32, i32
  }
  func.func @transform_1(%arg0: i32) -> (i32, i32) {
    %c0_i32 = arith.constant 0 : i32
    %c0_i32_0 = arith.constant 0 : i32
    %c0_i32_1 = arith.constant 0 : i32
    return %c0_i32, %c0_i32_0 : i32, i32
  }
  func.func @transform_2(%arg0: i32) -> (i32, i32) {
    %c0_i32 = arith.constant 0 : i32
    %c0_i32_0 = arith.constant 0 : i32
    %c0_i32_1 = arith.constant 0 : i32
    return %c0_i32, %c0_i32_0 : i32, i32
  }
  func.func @transform_3(%arg0: i32) -> (i32, i32) {
    %c0_i32 = arith.constant 0 : i32
    %c0_i32_0 = arith.constant 0 : i32
    %c0_i32_1 = arith.constant 0 : i32
    return %c0_i32, %c0_i32_0 : i32, i32
  }
  func.func @transform_4(%arg0: i32) -> (i32, i32) {
    %c0_i32 = arith.constant 0 : i32
    %c0_i32_0 = arith.constant 0 : i32
    %c0_i32_1 = arith.constant 0 : i32
    return %c0_i32, %c0_i32_0 : i32, i32
  }
}

</mosaic_0001>

<llo_original>
// kernel: tpu_custom_call.1
$region0: #{tpu_custom_call.1}
  #allocation0 [shape = 'u32[]', space=smem, size = 0x4, offset = 0x4, fixed_abs, tag = 'smem constant byte address 0x4 - core index']
  #allocation1 [shape = 'u32[72,128]{1,0:T(1,128)}', space=vmem, size = 0x9000, scoped, tag = 'internal scratch']
  %s0 = inlined_call_operand.hbm [shape: f32[16,10], index: 0, kind: input, shape index: {}]
  %s1 = inlined_call_operand.hbm [shape: f32[1,10], index: 1, kind: input, shape index: {}]
  %s2 = inlined_call_operand.vmem [shape: f32[1,10], index: 2, kind: input, shape index: {}]
  %s3 = inlined_call_operand.hbm [shape: f32[10,32], index: 3, kind: input, shape index: {}]
  %s4 = inlined_call_operand.hbm [shape: f32[16,32], index: 4, kind: output, shape index: {}]
  %s5 = sld [smem:[#allocation0]]
  $region38: #{tpu_custom_call.1} parent=0
    _
  %s7 = ssub.s32 1, %s5
  %s8 = scalar_select 0, %s7, %s5
  $region1: #{tpu_custom_call.1} parent=0
    #allocation2 [shape = 'u8[8192]{0}', space=vmem, size = 0x2000, scoped, tag = 'input window, operand 0, single buffered']
    #allocation3 [shape = 's32[1]{0}', space=sflag, size = 0x4, scoped, tag = 'scoped memory for tpu_custom_call.1']
    #allocation4 [shape = 's32[1]{0}', space=sflag, size = 0x4, scoped, tag = 'scoped memory for tpu_custom_call.1']
    #allocation5 [shape = 'u8[512]{0}', space=vmem, size = 0x400, scoped, tag = 'input window, operand 1, single buffered']
    #allocation6 [shape = 's32[1]{0}', space=sflag, size = 0x4, scoped, tag = 'scoped memory for tpu_custom_call.1']
    #allocation7 [shape = 'u8[8192]{0}', space=vmem, size = 0x2000, scoped, tag = 'input window, operand 3, single buffered']
    #allocation8 [shape = 'u8[8192]{0}', space=vmem, size = 0x2000, scoped, tag = 'output window, operand 0, single buffered']
    %9 = vsyncpa [#allocation3], 0
    %10 = vsyncpa [#allocation6], 0
    %11 = vsyncpa [#allocation4], 0
    // Predicated region
    $region2: #{tpu_custom_call.1} parent=1 // pred_check
      _
    $region3: #{tpu_custom_call.1} parent=1 // pred_check_branch
      %13 = sbr.rel (0) target = $region5
    $region4: #{tpu_custom_call.1} parent=1 // pred_region
      %15 = vsyncadd [#allocation3], 0
      %s16 = sshll.u32 %s0, 4
      %s17 = int_to_ptr.hbm [resolvable:$true] %s16
      %s18 = sshll.u32 [#allocation2], 4
      %s19 = int_to_ptr.vmem [resolvable:$true] %s18
      %24 = dma.hbm_to_vmem [thread:$0]  %s17, 256, %s19, [#allocation3], 128, 128, 8
    $region5: #{tpu_custom_call.1} parent=1 // pred_fallthru
      _
    // Predicated region
    $region6: #{tpu_custom_call.1} parent=1 // pred_check
      _
    $region7: #{tpu_custom_call.1} parent=1 // pred_check_branch
      %26 = sbr.rel (0) target = $region9
    $region8: #{tpu_custom_call.1} parent=1 // pred_region
      %28 = vsyncadd [#allocation6], 0
      %s30 = sshll.u32 %s1, 4
      %s31 = int_to_ptr.hbm [resolvable:$true] %s30
      %s32 = sshll.u32 [#allocation5], 4
      %s33 = int_to_ptr.vmem [resolvable:$true] %s32
      %35 = dma.hbm_to_vmem [thread:$0]  %s31, 16, %s33, [#allocation6]
    $region9: #{tpu_custom_call.1} parent=1 // pred_fallthru
      _
    // Predicated region
    $region10: #{tpu_custom_call.1} parent=1 // pred_check
      _
    $region11: #{tpu_custom_call.1} parent=1 // pred_check_branch
      %37 = sbr.rel (0) target = $region13
    $region12: #{tpu_custom_call.1} parent=1 // pred_region
      _
    $region13: #{tpu_custom_call.1} parent=1 // pred_fallthru
      _
    // Predicated region
    $region14: #{tpu_custom_call.1} parent=1 // pred_check
      _
    $region15: #{tpu_custom_call.1} parent=1 // pred_check_branch
      %39 = sbr.rel (0) target = $region17
    $region16: #{tpu_custom_call.1} parent=1 // pred_region
      %41 = vsyncadd [#allocation6], 0
      %s42 = sshll.u32 %s3, 4
      %s43 = int_to_ptr.hbm [resolvable:$true] %s42
      %s44 = sshll.u32 [#allocation7], 4
      %s45 = int_to_ptr.vmem [resolvable:$true] %s44
      %50 = dma.hbm_to_vmem [thread:$0]  %s43, 256, %s45, [#allocation6], 128, 128, 8
    $region17: #{tpu_custom_call.1} parent=1 // pred_fallthru
      _
    // Predicated region
    $region18: #{tpu_custom_call.1} parent=1 // pred_check
      _
    $region19: #{tpu_custom_call.1} parent=1 // pred_check_branch
      %52 = sbr.rel (0) target = $region21
    $region20: #{tpu_custom_call.1} parent=1 // pred_region
      %54 = dma.done [#allocation3], 256
    $region21: #{tpu_custom_call.1} parent=1 // pred_fallthru
      _
    // Predicated region
    $region22: #{tpu_custom_call.1} parent=1 // pred_check
      _
    $region23: #{tpu_custom_call.1} parent=1 // pred_check_branch
      %56 = sbr.rel (0) target = $region25
    $region24: #{tpu_custom_call.1} parent=1 // pred_region
      %58 = dma.done [#allocation6], 16
    $region25: #{tpu_custom_call.1} parent=1 // pred_fallthru
      _
    // Predicated region
    $region26: #{tpu_custom_call.1} parent=1 // pred_check
      _
    $region27: #{tpu_custom_call.1} parent=1 // pred_check_branch
      %60 = sbr.rel (0) target = $region29
    $region28: #{tpu_custom_call.1} parent=1 // pred_region
      %62 = dma.done [#allocation6], 256
    $region29: #{tpu_custom_call.1} parent=1 // pred_fallthru
      _
    %v63 = vld [vmem:[#allocation2] sm:$0xff]
    %v64 = vld [vmem:[#allocation2 + $0x8] sm:$0xff]
    %v65 = vld [vmem:[#allocation5] sm:$0x1]
    %v66 = vld [vmem:[%s2] sm:$0x1]
    %v67 = vmul.f32 %v66, 2.0
    %v68 = vrcp.pop %v67
    %v69 = vmul.f32 %v67, %v68
    %v70 = vsub.f32 1.0, %v69
    %v71 = vmul.f32 %v68, %v70
    %v72 = vadd.f32 %v68, %v71
    %vm73 = vweird.f32 %v67
    %vm74 = vweird.f32 %v68
    %vm75 = vmor %vm73, %vm74
    %v76 = vsel %vm75, %v68, %v72
    %v77 = vand.u32 2147483647, %v67
    %vm78 = vcmp.eq.f32.partialorder %v77, 8.507059e+37
    %v79 = vand.u32 %v67, 2147483648
    %v80 = vor.u32 1.1754944e-38, %v79
    %v81 = vsel %vm78, %v80, %v76
    %v83 = vperm.slane %v65, 0
    %v85 = vsub.f32 %v63, %v83
    %v86 = vsub.f32 %v64, %v83
    %v87 = vmul.f32 %v85, %v85
    %v88 = vmul.f32 %v86, %v86
    %v89 = vsub.f32 0.0, %v87
    %v90 = vsub.f32 0.0, %v88
    %v92 = vperm.slane %v81, 0
    %v94 = vmul.f32 %v89, %v92
    %v95 = vmul.f32 %v90, %v92
    %v96 = vlog2.pop %v66
    %v97 = vmul.f32 %v96, 0.6931472
    %v98 = vmul.f32 %v97, 0.5
    %v100 = vperm.slane %v98, 0
    %v102 = vsub.f32 %v94, %v100
    %v103 = vsub.f32 %v95, %v100
    %vm104 = vcmask 80896
    %v105 = vsel %vm104, %v102, -inf
    %106 = vmax.xlane.f32.xlu0 %v105
    %v107 = vpop.xlane.xlu0 %106
    %v108 = vsel %vm104, %v103, -inf
    %109 = vmax.xlane.f32.xlu0 %v108
    %v110 = vpop.xlane.xlu0 %109
    %v111 = vsub.f32 %v102, %v107
    %v112 = vsub.f32 %v103, %v110
    %v113 = vmul.f32 %v111, 1.442695
    %v114 = vpow.pop %v113
    %v115 = vmul.f32 %v112, 1.442695
    %v116 = vpow.pop %v115
    %v117 = vsel %vm104, %v114, 0.0
    %118 = vadd.xlane.f32.xlu0 %v117
    %v119 = vpop.xlane.xlu0 %118
    %v120 = vsel %vm104, %v116, 0.0
    %121 = vadd.xlane.f32.xlu0 %v120
    %v122 = vpop.xlane.xlu0 %121
    %v123 = vrcp.pop %v119
    %v124 = vmul.f32 %v119, %v123
    %v125 = vsub.f32 1.0, %v124
    %v126 = vmul.f32 %v123, %v125
    %v127 = vadd.f32 %v123, %v126
    %vm128 = vweird.f32 %v119
    %vm129 = vweird.f32 %v123
    %vm130 = vmor %vm128, %vm129
    %v131 = vsel %vm130, %v123, %v127
    %v132 = vand.u32 2147483647, %v119
    %vm133 = vcmp.eq.f32.partialorder %v132, 8.507059e+37
    %v134 = vand.u32 %v119, 2147483648
    %v135 = vor.u32 1.1754944e-38, %v134
    %v136 = vsel %vm133, %v135, %v131
    %v137 = vrcp.pop %v122
    %v138 = vmul.f32 %v122, %v137
    %v139 = vsub.f32 1.0, %v138
    %v140 = vmul.f32 %v137, %v139
    %v141 = vadd.f32 %v137, %v140
    %vm142 = vweird.f32 %v122
    %vm143 = vweird.f32 %v137
    %vm144 = vmor %vm142, %vm143
    %v145 = vsel %vm144, %v137, %v141
    %v146 = vand.u32 2147483647, %v122
    %vm147 = vcmp.eq.f32.partialorder %v146, 8.507059e+37
    %v148 = vand.u32 %v122, 2147483648
    %v149 = vor.u32 1.1754944e-38, %v148
    %v150 = vsel %vm147, %v149, %v145
    %v151 = vmul.f32 %v114, %v136
    %v152 = vmul.f32 %v116, %v150
    %v153 = vld [vmem:[#allocation7] sm:$0xff]
    %v154 = vld [vmem:[#allocation7 + $0x8] sm:$0x3]
    %v156 = vsel %vm104, %v151, 0
    %v159 = vsel %vm104, %v152, 0
    %vm161 = vcmask 1041408
    %v163 = vsel %vm161, %v154, 0
    %165 = vmatpush.msra.mxu0 0.0
    %166 = vmatpush.msra.mxu0 0.0
    %167 = vmatpush.msra.mxu0 0.0
    %168 = vmatpush.msra.mxu0 0.0
    %169 = vmatpush.msra.mxu0 0.0
    %170 = vmatpush.msra.mxu0 0.0
    %171 = vmatpush.msra.mxu0 0.0
    %172 = vmatpush.msra.mxu0 0.0
    %173 = vmatpush.msra.mxu0 0.0
    %174 = vmatpush.msra.mxu0 0.0
    %175 = vmatpush.msra.mxu0 0.0
    %176 = vmatpush.msra.mxu0 0.0
    %177 = vmatpush.msra.mxu0 0.0
    %178 = vmatpush.msra.mxu0 0.0
    %179 = vmatpush.msra.mxu0 %v163
    %180 = vmatpush.msra.mxu0 %v153
    %181 = vmatmul.f32.gmra.mxu0 %v156
    %v182 = vpop.f32.mrf.mxu0
    %v183 = vadd.f32 0.0, %v182
    %184 = vmatmul.f32.gmra.mxu0 %v159
    %v185 = vpop.f32.mrf.mxu0
    %v186 = vadd.f32 0.0, %v185
    %187 = vdwg.mxu0
    %vm188 = vcmask 261120
    %189 = vst.msk [vmem:[#allocation8] sm:$0xff] %vm188, %v183
    %190 = vst.msk [vmem:[#allocation8 + $0x8] sm:$0xff] %vm188, %v186
    // Predicated region
    $region30: #{tpu_custom_call.1} parent=1 // pred_check
      _
    $region31: #{tpu_custom_call.1} parent=1 // pred_check_branch
      %192 = sbr.rel (0) target = $region33
    $region32: #{tpu_custom_call.1} parent=1 // pred_region
      %194 = vsyncadd [#allocation4], 0
      %s195 = sshll.u32 [#allocation8], 4
      %s196 = int_to_ptr.vmem [resolvable:$true] %s195
      %s197 = sshll.u32 %s4, 4
      %s198 = int_to_ptr.hbm [resolvable:$true] %s197
      %203 = dma.vmem_to_hbm [thread:$0]  %s196, 256, %s198, [#allocation4], 128, 128, 8
    $region33: #{tpu_custom_call.1} parent=1 // pred_fallthru
      _
    // Predicated region
    $region34: #{tpu_custom_call.1} parent=1 // pred_check
      _
    $region35: #{tpu_custom_call.1} parent=1 // pred_check_branch
      %205 = sbr.rel (0) target = $region37
    $region36: #{tpu_custom_call.1} parent=1 // pred_region
      %207 = dma.done [#allocation4], 256
    $region37: #{tpu_custom_call.1} parent=1 // pred_fallthru
      _
    %208 = vsyncpa [#allocation3], 1
    %209 = vsyncpa [#allocation6], 1
    %210 = vsyncpa [#allocation4], 1

</llo_original>
